<compile_context>
chip_gen: v7x
topology: tpu7x:2x2x1
jax: 0.10.0
libtpu: 0.0.40
codegen_flags: <defaults>
</compile_context>

<pallas_src>
from functools import partial

import jax
import jax.numpy as jnp
from jax.experimental import pallas as pl
from jax.experimental.pallas import tpu as pltpu


def _mse_kernel(o_ref, t_ref, out_ref, acc_ref, *, inv_n, tail_size):
    # o_ref / t_ref: (TB, TN) tile of the flattened [B, N] inputs.
    # out_ref: (TB, 128) lane-dense result tile; acc_ref: (TB, 1) f32 scratch.
    k = pl.program_id(2)
    nk = pl.num_programs(2)

    @pl.when(k == 0)
    def _():
        acc_ref[...] = jnp.zeros_like(acc_ref)

    d = o_ref[...].astype(jnp.float32) - t_ref[...].astype(jnp.float32)
    sq = d * d

    if tail_size:
        # N % TN != 0: the globally-last reduction block hangs past column N.
        # Out-of-bounds input columns hold unspecified data -> mask them out.
        is_tail = jnp.logical_and(
            pl.program_id(1) == pl.num_programs(1) - 1, k == nk - 1)

        @pl.when(jnp.logical_not(is_tail))
        def _():
            acc_ref[...] += jnp.sum(sq, axis=-1, keepdims=True)

        @pl.when(is_tail)
        def _():
            col = jax.lax.broadcasted_iota(jnp.int32, sq.shape, 1)
            sq_m = jnp.where(col < tail_size, sq, 0.0)  # select: no NaN leak
            acc_ref[...] += jnp.sum(sq_m, axis=-1, keepdims=True)
    else:
        acc_ref[...] += jnp.sum(sq, axis=-1, keepdims=True)

    @pl.when(k == nk - 1)
    def _():
        # Normalize by the true per-sample element count; broadcast across
        # the 128 lanes so the final store is lane-dense.
        res = acc_ref[...] * jnp.float32(inv_n)
        out_ref[...] = jnp.broadcast_to(res, out_ref.shape)


@partial(jax.jit, static_argnames=("block_bytes",))
def _mse_score_jit(outputs, targets, block_bytes=4 * 1024 * 1024):
    B = outputs.shape[0]
    N = 1
    for d in outputs.shape[1:]:
        N *= int(d)

    o2 = outputs.reshape(B, N)
    t2 = targets.reshape(B, N)

    itemsize = o2.dtype.itemsize
    # Rows needed to fill every vreg sublane for this dtype.
    row_pack = {4: 8, 2: 16, 1: 32}.get(itemsize, 8)

    # Lane tile: large multiple of 128, bounded by the per-input block budget.
    n_lane = pl.cdiv(N, 128) * 128
    tn = min(n_lane,
             max(128, (block_bytes // (row_pack * itemsize)) // 128 * 128))
    kb_total = pl.cdiv(N, tn)      # reduction blocks covering the real N
    tail = N % tn                  # 0 => no column masking needed

    # Adaptive row block: if TN is capped by a small N, pack more rows per
    # block so DMA bursts stay roofline-sized...
    b_ceil = pl.cdiv(B, row_pack) * row_pack
    tb_cap = max(row_pack,
                 (block_bytes // (tn * itemsize)) // row_pack * row_pack)
    tb = min(tb_cap, b_ceil)
    if B > row_pack:
        # ...but keep >= 2 row blocks when B allows, so the parallel row axis
        # can be sharded across both v7x TensorCores.
        tb = min(tb, max(row_pack, pl.cdiv(pl.cdiv(B, 2), row_pack) * row_pack))
    row_blocks = pl.cdiv(B, tb)

    # Tiny-batch megacore split: with a single row block, split the reduction
    # into 2 parallel halves (one per TensorCore); halves are summed below.
    ns = 2 if (row_blocks == 1 and kb_total >= 2 and kb_total % 2 == 0) else 1
    nk = kb_total // ns

    grid = (row_blocks, ns, nk)

    out = pl.pallas_call(
        partial(_mse_kernel, inv_n=1.0 / float(N), tail_size=tail),
        out_shape=jax.ShapeDtypeStruct((B, ns * 128), jnp.float32),
        grid_spec=pltpu.PrefetchScalarGridSpec(
            num_scalar_prefetch=0,
            grid=grid,
            in_specs=[
                pl.BlockSpec((tb, tn), lambda i, s, k: (i, s * nk + k)),
                pl.BlockSpec((tb, tn), lambda i, s, k: (i, s * nk + k)),
            ],
            out_specs=pl.BlockSpec((tb, 128), lambda i, s, k: (i, s)),
            scratch_shapes=[pltpu.VMEM((tb, 1), jnp.float32)],
        ),
        compiler_params=pltpu.CompilerParams(
            dimension_semantics=("parallel", "parallel", "arbitrary"),
            vmem_limit_bytes=40 * 1024 * 1024,
        ),
        cost_estimate=pl.CostEstimate(
            flops=3 * B * N,
            transcendentals=0,
            bytes_accessed=2 * B * N * itemsize + B * ns * 128 * 4,
        ),
    )(o2, t2)

    # Each split column already carries partial_sum / N; summing the splits
    # gives the per-sample mean.
    scores = out[:, 0]
    for j in range(1, ns):
        scores = scores + out[:, j * 128]
    return scores  # [B] per-sample MSE, f32


def mse_score(outputs, targets):
    """Per-sample MSE. outputs/targets: [B, ...]. Returns list of B scalars."""
    assert outputs.shape == targets.shape
    scores = _mse_score_jit(outputs, targets)
    # Single device->host transfer, then a Python list of numpy scalars
    # (matches the PyTorch .cpu().numpy() per-sample API).
    return list(jax.device_get(scores))


def _ref(o, t):
    return [jnp.mean((o[i].astype(jnp.float32) - t[i].astype(jnp.float32)) ** 2)
            for i in range(o.shape[0])]


if __name__ == "__main__":
    key = jax.random.PRNGKey(0)
    k_o, k_t = jax.random.split(key)

    # 1) Small NCHW shapes consistent with a conv-style pipeline.
    B, C, H, W = 2, 4, 16, 16
    outputs = jax.random.normal(k_o, (B, C, H, W), dtype=jnp.float32)
    targets = jax.random.normal(k_t, (B, C, H, W), dtype=jnp.float32)

    jax.block_until_ready(_mse_score_jit(outputs, targets))
    scores = mse_score(outputs, targets)
    for s, r in zip(scores, _ref(outputs, targets)):
        assert jnp.allclose(s, r, rtol=1e-5, atol=1e-6), (s, r)

    # 2) bf16, non-128-aligned N: exercises the in-kernel tail mask (no pad).
    B2, D2 = 3, 500
    o_b = jax.random.normal(k_o, (B2, D2), dtype=jnp.bfloat16)
    t_b = jax.random.normal(k_t, (B2, D2), dtype=jnp.bfloat16)
    for s, r in zip(mse_score(o_b, t_b), _ref(o_b, t_b)):
        assert jnp.allclose(s, r, rtol=1e-3, atol=1e-4), (s, r)

    # 3) Tiny batch + multi-block reduction with a forced small block size:
    #    exercises the 2-way parallel split of the N axis plus the tail mask.
    B3, D3 = 2, 2000
    o_s = jax.random.normal(k_o, (B3, D3), dtype=jnp.float32)
    t_s = jax.random.normal(k_t, (B3, D3), dtype=jnp.float32)
    s3 = jax.block_until_ready(
        _mse_score_jit(o_s, t_s, block_bytes=16 * 1024))
    for s, r in zip(list(jax.device_get(s3)), _ref(o_s, t_s)):
        assert jnp.allclose(s, r, rtol=1e-5, atol=1e-6), (s, r)

    # 4) Large-ish B with tiny N: exercises adaptive TB and ragged row blocks.
    B4 = 37
    o_w = jax.random.normal(k_o, (B4, 3, 5), dtype=jnp.float32)
    t_w = jax.random.normal(k_t, (B4, 3, 5), dtype=jnp.float32)
    for s, r in zip(mse_score(o_w, t_w), _ref(o_w, t_w)):
        assert jnp.allclose(s, r, rtol=1e-5, atol=1e-6), (s, r)

    print("KERNEL_OK")
</pallas_src>

<mosaic_0001>
module attributes {stable_mosaic.version = 11 : i64} {
  func.func @_mse_kernel(%arg0: i32, %arg1: i32, %arg2: i32, %arg3: memref<8x1024xf32, #tpu.memory_space<vmem>>, %arg4: memref<8x1024xf32, #tpu.memory_space<vmem>>, %arg5: memref<8x128xf32, #tpu.memory_space<vmem>>, %arg6: memref<8x1xf32, #tpu.memory_space<vmem>>) attributes {dimension_semantics = [#tpu.dimension_semantics<parallel>, #tpu.dimension_semantics<parallel>, #tpu.dimension_semantics<arbitrary>], iteration_bounds = array<i64: 1, 1, 1>, scalar_prefetch = 0 : i64, scratch_operands = 1 : i64, tpu.core_type = #tpu.core_type<tc>, window_params = [{transform_indices = @transform_0, window_bounds = array<i64: 8, 1024>}, {transform_indices = @transform_1, window_bounds = array<i64: 8, 1024>}, {transform_indices = @transform_2, window_bounds = array<i64: 8, 128>}]} {
    %c0_i32 = arith.constant 0 : i32
    %0 = arith.cmpi eq, %arg2, %c0_i32 : i32
    %1 = arith.extui %0 : i1 to i32
    %c0_i32_0 = arith.constant 0 : i32
    %2 = arith.cmpi ne, %1, %c0_i32_0 : i32
    scf.if %2 {
      %cst_10 = arith.constant 0.000000e+00 : f32
      %15 = vector.broadcast %cst_10 : f32 to vector<8x1xf32>
      %c0_11 = arith.constant 0 : index
      %c0_12 = arith.constant 0 : index
      %16 = vector.load %arg6[%c0_11, %c0_12] : memref<8x1xf32, #tpu.memory_space<vmem>>, vector<8x1xf32>
      tpu.vector_store %arg6[%c0_11, %c0_12], %15 {strides = array<i32>} : memref<8x1xf32, #tpu.memory_space<vmem>>, vector<8x1xf32>,
    } else {
    }
    %c0 = arith.constant 0 : index
    %c0_1 = arith.constant 0 : index
    %3 = vector.load %arg3[%c0, %c0_1] : memref<8x1024xf32, #tpu.memory_space<vmem>>, vector<8x1024xf32>
    %c0_2 = arith.constant 0 : index
    %c0_3 = arith.constant 0 : index
    %4 = vector.load %arg4[%c0_2, %c0_3] : memref<8x1024xf32, #tpu.memory_space<vmem>>, vector<8x1024xf32>
    %5 = arith.subf %3, %4 : vector<8x1024xf32>
    %6 = arith.mulf %5, %5 : vector<8x1024xf32>
    %c0_4 = arith.constant 0 : index
    %c0_5 = arith.constant 0 : index
    %7 = vector.load %arg6[%c0_4, %c0_5] : memref<8x1xf32, #tpu.memory_space<vmem>>, vector<8x1xf32>
    %cst = arith.constant dense<0.000000e+00> : vector<8xf32>
    %8 = vector.multi_reduction <add>, %6, %cst [1] : vector<8x1024xf32> to vector<8xf32>
    %9 = vector.shape_cast %8 : vector<8xf32> to vector<8x1xf32>
    %10 = arith.addf %7, %9 : vector<8x1xf32>
    %c0_6 = arith.constant 0 : index
    %c0_7 = arith.constant 0 : index
    %11 = vector.load %arg6[%c0_6, %c0_7] : memref<8x1xf32, #tpu.memory_space<vmem>>, vector<8x1xf32>
    tpu.vector_store %arg6[%c0_6, %c0_7], %10 {strides = array<i32>} : memref<8x1xf32, #tpu.memory_space<vmem>>, vector<8x1xf32>,
    %c0_i32_8 = arith.constant 0 : i32
    %12 = arith.cmpi eq, %arg2, %c0_i32_8 : i32
    %13 = arith.extui %12 : i1 to i32
    %c0_i32_9 = arith.constant 0 : i32
    %14 = arith.cmpi ne, %13, %c0_i32_9 : i32
    scf.if %14 {
      %c0_10 = arith.constant 0 : index
      %c0_11 = arith.constant 0 : index
      %15 = vector.load %arg6[%c0_10, %c0_11] : memref<8x1xf32, #tpu.memory_space<vmem>>, vector<8x1xf32>
      %cst_12 = arith.constant 9.765625E-4 : f32
      %16 = vector.broadcast %cst_12 : f32 to vector<8x1xf32>
      %17 = arith.mulf %15, %16 : vector<8x1xf32>
      %18 = vector.shape_cast %17 : vector<8x1xf32> to vector<8x1xf32>
      %19 = vector.broadcast %18 : vector<8x1xf32> to vector<8x128xf32>
      %c0_13 = arith.constant 0 : index
      %c0_14 = arith.constant 0 : index
      %20 = vector.load %arg5[%c0_13, %c0_14] : memref<8x128xf32, #tpu.memory_space<vmem>>, vector<8x128xf32>
      tpu.vector_store %arg5[%c0_13, %c0_14], %19 {strides = array<i32>} : memref<8x128xf32, #tpu.memory_space<vmem>>, vector<8x128xf32>,
    } else {
    }
    return
  }
  func.func @transform_0(%arg0: i32, %arg1: i32, %arg2: i32) -> (i32, i32) {
    %c1_i32 = arith.constant 1 : i32
    %0 = arith.muli %arg1, %c1_i32 : i32
    %1 = arith.addi %0, %arg2 : i32
    %c0_i32 = arith.constant 0 : i32
    return %arg0, %1 : i32, i32
  }
  func.func @transform_1(%arg0: i32, %arg1: i32, %arg2: i32) -> (i32, i32) {
    %c1_i32 = arith.constant 1 : i32
    %0 = arith.muli %arg1, %c1_i32 : i32
    %1 = arith.addi %0, %arg2 : i32
    %c0_i32 = arith.constant 0 : i32
    return %arg0, %1 : i32, i32
  }
  func.func @transform_2(%arg0: i32, %arg1: i32, %arg2: i32) -> (i32, i32) {
    %c0_i32 = arith.constant 0 : i32
    return %arg0, %arg1 : i32, i32
  }
}

</mosaic_0001>

<llo_original>
// kernel: _mse_score_jit.1
$region0: #{_mse_score_jit.1}
  #allocation0 [shape = 'u32[]', space=smem, size = 0x4, offset = 0x4, fixed_abs, tag = 'smem constant byte address 0x4 - core index']
  #allocation1 [shape = 'u32[144,128]{1,0:T(1,128)}', space=vmem, size = 0x12000, scoped, tag = 'internal scratch']
  #allocation2 [shape = 'f32[8,1]{1,0:T(8,128)}', space=vmem, size = 0x1000, scoped, tag = 'scratch operand']
  %s0 = inlined_call_operand.vmem [shape: f32[2,1024], index: 0, kind: input, shape index: {}]
  %s1 = inlined_call_operand.vmem [shape: f32[2,1024], index: 1, kind: input, shape index: {}]
  %s2 = inlined_call_operand.vmem [shape: f32[2,128], index: 2, kind: output, shape index: {}]
  %s3 = sld [smem:[#allocation0]]
  $region56: #{_mse_score_jit.1} parent=0
    _
  %s5 = ssub.s32 1, %s3
  %s6 = scalar_select 0, %s5, %s3
  $region1: #{_mse_score_jit.1} parent=0
    #allocation3 [shape = 'u8[4096]{0}', space=vmem, size = 0x1000, scoped, tag = 'output window, operand 0, single buffered']
    // Predicated region
    $region2: #{_mse_score_jit.1} parent=1 // pred_check
      _
    $region3: #{_mse_score_jit.1} parent=1 // pred_check_branch
      %8 = sbr.rel (0) target = $region5
    $region4: #{_mse_score_jit.1} parent=1 // pred_region
      %s9 = sadd.s32 0, 0
      %s10 = smul.u32 8, %s9
      %p11 = scmp.lt.s32.totalorder %s10, 7
      %s12 = scalar_select %p11, %s10, 7
      %s13 = smul.addr %s12, 2
      %s14 = scalar_lea.vmem %s0, %s13
      %s15 = sadd.s32 0, 0
      %s16 = smul.u32 8, %s15
    $region5: #{_mse_score_jit.1} parent=1 // pred_fallthru
      _
    // Predicated region
    $region6: #{_mse_score_jit.1} parent=1 // pred_check
      _
    $region7: #{_mse_score_jit.1} parent=1 // pred_check_branch
      %18 = sbr.rel (0) target = $region9
    $region8: #{_mse_score_jit.1} parent=1 // pred_region
      %s19 = sadd.s32 0, 0
      %s20 = smul.u32 8, %s19
      %p21 = scmp.lt.s32.totalorder %s20, 7
      %s22 = scalar_select %p21, %s20, 7
      %s23 = smul.addr %s22, 2
      %s24 = scalar_lea.vmem %s1, %s23
      %s25 = sadd.s32 0, 0
      %s26 = smul.u32 8, %s25
    $region9: #{_mse_score_jit.1} parent=1 // pred_fallthru
      _
    %s27 = sadd.s32 0, 0
    %s28 = smul.u32 8, %s27
    %p29 = scmp.lt.s32.totalorder %s28, 7
    %s30 = scalar_select %p29, %s28, 7
    %s31 = smul.addr %s30, 2
    %s32 = scalar_lea.vmem %s0, %s31
    %s33 = sadd.s32 0, 0
    %s34 = smul.u32 8, %s33
    %p35 = scmp.lt.s32.totalorder %s34, 7
    %s36 = scalar_select %p35, %s34, 7
    %s37 = smul.addr %s36, 2
    %s38 = scalar_lea.vmem %s1, %s37
    %s39 = sadd.s32 0, 0
    %s40 = smul.u32 8, %s39
    %p41 = scmp.lt.s32.totalorder %s40, 7
    %s42 = scalar_select %p41, %s40, 7
    %s43 = smul.addr %s42, 2
    %s44 = scalar_lea.vmem %s0, %s43
    %s45 = sadd.s32 0, 0
    %s46 = smul.u32 8, %s45
    %s47 = sadd.s32 0, 0
    %s48 = smul.u32 8, %s47
    %p49 = scmp.lt.s32.totalorder %s48, 7
    %s50 = scalar_select %p49, %s48, 7
    %s51 = smul.addr %s50, 2
    %s52 = scalar_lea.vmem %s1, %s51
    %s53 = sadd.s32 0, 0
    %s54 = smul.u32 8, %s53
    %p55 = scmp.eq.s32.totalorder 0, 0
    // Predicated region
    $region10: #{_mse_score_jit.1} parent=1 // pred_check
      %p56 = pneg %p55
    $region11: #{_mse_score_jit.1} parent=1 // pred_check_branch
      %58 = sbr.rel (%p56) target = $region13
    $region12: #{_mse_score_jit.1} parent=1 // pred_region
      %vm59 = vcmask 7168
      %60 = vst.msk [vmem:[#allocation2] sm:$0xff] %vm59, 0.0
    $region13: #{_mse_score_jit.1} parent=1 // pred_fallthru
      _
    %v61 = vld [vmem:[%s44] sm:$0xff]
    %v62 = vld [vmem:[%s44 + $0x8] sm:$0xff]
    %v63 = vld [vmem:[%s44 + $0x10] sm:$0xff]
    %v64 = vld [vmem:[%s44 + $0x18] sm:$0xff]
    %v65 = vld [vmem:[%s44 + $0x20] sm:$0xff]
    %v66 = vld [vmem:[%s44 + $0x28] sm:$0xff]
    %v67 = vld [vmem:[%s44 + $0x30] sm:$0xff]
    %v68 = vld [vmem:[%s44 + $0x38] sm:$0xff]
    %v69 = vld [vmem:[%s52] sm:$0xff]
    %v70 = vld [vmem:[%s52 + $0x8] sm:$0xff]
    %v71 = vld [vmem:[%s52 + $0x10] sm:$0xff]
    %v72 = vld [vmem:[%s52 + $0x18] sm:$0xff]
    %v73 = vld [vmem:[%s52 + $0x20] sm:$0xff]
    %v74 = vld [vmem:[%s52 + $0x28] sm:$0xff]
    %v75 = vld [vmem:[%s52 + $0x30] sm:$0xff]
    %v76 = vld [vmem:[%s52 + $0x38] sm:$0xff]
    %v77 = vsub.f32 %v61, %v69
    %v78 = vsub.f32 %v62, %v70
    %v79 = vsub.f32 %v63, %v71
    %v80 = vsub.f32 %v64, %v72
    %v81 = vsub.f32 %v65, %v73
    %v82 = vsub.f32 %v66, %v74
    %v83 = vsub.f32 %v67, %v75
    %v84 = vsub.f32 %v68, %v76
    %v85 = vmul.f32 %v77, %v77
    %v86 = vmul.f32 %v78, %v78
    %v87 = vmul.f32 %v79, %v79
    %v88 = vmul.f32 %v80, %v80
    %v89 = vmul.f32 %v81, %v81
    %v90 = vmul.f32 %v82, %v82
    %v91 = vmul.f32 %v83, %v83
    %v92 = vmul.f32 %v84, %v84
    %v93 = vld [vmem:[#allocation2] sm:$0xff]
    %v102 = vcombine.low %v85, %v87
    %v103 = vcombine.high %v85, %v87
    %v104 = vcombine.low %v89, %v91
    %v105 = vcombine.high %v89, %v91
    %v107 = vunpack.c.l.s4 1983009808
    %v108 = vunpack.c.0.s8 %v107
    %v109 = vlaneseq
    %v110 = vshrl.u32 %v109, 7
    %v111 = vsub.s32 %v108, %v110
    %v112 = vrot.slane %v102, %v111
    %v114 = vunpack.c.l.s4 1983009808
    %v115 = vunpack.c.0.s8 %v114
    %v116 = vlaneseq
    %v117 = vshrl.u32 %v116, 7
    %v118 = vsub.s32 %v115, %v117
    %v119 = vrot.slane %v103, %v118
    %v121 = vunpack.c.l.s4 1983009808
    %v122 = vunpack.c.0.s8 %v121
    %v123 = vlaneseq
    %v124 = vshrl.u32 %v123, 7
    %v125 = vsub.s32 %v122, %v124
    %v126 = vrot.slane %v104, %v125
    %v128 = vunpack.c.l.s4 1983009808
    %v129 = vunpack.c.0.s8 %v128
    %v130 = vlaneseq
    %v131 = vshrl.u32 %v130, 7
    %v132 = vsub.s32 %v129, %v131
    %v133 = vrot.slane %v105, %v132
    %v134 = vcombine.low %v112, %v126
    %v135 = vcombine.high %v112, %v126
    %v136 = vcombine.low %v119, %v133
    %v137 = vcombine.high %v119, %v133
    %v138 = vcombine.low %v86, %v88
    %v139 = vcombine.high %v86, %v88
    %v140 = vcombine.low %v90, %v92
    %v141 = vcombine.high %v90, %v92
    %v143 = vunpack.c.l.s4 1983009808
    %v144 = vunpack.c.0.s8 %v143
    %v145 = vlaneseq
    %v146 = vshrl.u32 %v145, 7
    %v147 = vsub.s32 %v144, %v146
    %v148 = vrot.slane %v138, %v147
    %v150 = vunpack.c.l.s4 1983009808
    %v151 = vunpack.c.0.s8 %v150
    %v152 = vlaneseq
    %v153 = vshrl.u32 %v152, 7
    %v154 = vsub.s32 %v151, %v153
    %v155 = vrot.slane %v139, %v154
    %v157 = vunpack.c.l.s4 1983009808
    %v158 = vunpack.c.0.s8 %v157
    %v159 = vlaneseq
    %v160 = vshrl.u32 %v159, 7
    %v161 = vsub.s32 %v158, %v160
    %v162 = vrot.slane %v140, %v161
    %v164 = vunpack.c.l.s4 1983009808
    %v165 = vunpack.c.0.s8 %v164
    %v166 = vlaneseq
    %v167 = vshrl.u32 %v166, 7
    %v168 = vsub.s32 %v165, %v167
    %v169 = vrot.slane %v141, %v168
    %v170 = vcombine.low %v148, %v162
    %v171 = vcombine.high %v148, %v162
    %v172 = vcombine.low %v155, %v169
    %v173 = vcombine.high %v155, %v169
    %v182 = vadd.f32 %v134, %v135
    %v183 = vadd.f32 %v182, %v136
    %v184 = vadd.f32 %v183, %v137
    %v185 = vadd.f32 %v184, %v170
    %v186 = vadd.f32 %v185, %v171
    %v187 = vadd.f32 %v186, %v172
    %v188 = vadd.f32 %v187, %v173
    %189 = vadd.xlane.f32.xlu0 %v188
    %v190 = vpop.xlane.xlu0 %189
    %v191 = vadd.f32 %v93, %v190
    %vm192 = vcmask 7168
    %193 = vst.msk [vmem:[#allocation2] sm:$0xff] %vm192, %v191
    // Predicated region
    $region14: #{_mse_score_jit.1} parent=1 // pred_check
      %p194 = pneg %p55
    $region15: #{_mse_score_jit.1} parent=1 // pred_check_branch
      %196 = sbr.rel (%p194) target = $region17
    $region16: #{_mse_score_jit.1} parent=1 // pred_region
      %v197 = vld [vmem:[#allocation2] sm:$0xff]
      %v198 = vmul.f32 %v197, 0.0009765625
      %200 = vset.pattern.permute.xlu0 0
      %201 = vperm.xlu0 %200, %v198
      %v202 = vpop.permute.xlu0 %201
      %204 = vst [vmem:[#allocation3] sm:$0xff] %v202
    $region17: #{_mse_score_jit.1} parent=1 // pred_fallthru
      _
    // Predicated region
    $region18: #{_mse_score_jit.1} parent=1 // pred_check
      _
    $region19: #{_mse_score_jit.1} parent=1 // pred_check_branch
      %206 = sbr.rel (0) target = $region21
    $region20: #{_mse_score_jit.1} parent=1 // pred_region
      // Predicated region
      $region22: #{_mse_score_jit.1} parent=20 // pred_check
        _
      $region23: #{_mse_score_jit.1} parent=20 // pred_check_branch
        %208 = sbr.rel (0) target = $region25
      $region24: #{_mse_score_jit.1} parent=20 // pred_region
        // Predicated region
        $region26: #{_mse_score_jit.1} parent=24 // pred_check
          _
        $region27: #{_mse_score_jit.1} parent=24 // pred_check_branch
          %210 = sbr.rel target = $region29
        $region28: #{_mse_score_jit.1} parent=24 // pred_region
          // Predicated region
          $region41: #{_mse_score_jit.1} parent=28 // pred_check
            _
          $region42: #{_mse_score_jit.1} parent=28 // pred_check_branch
            %225 = sbr.rel (0) target = $region44
          $region43: #{_mse_score_jit.1} parent=28 // pred_region
            loop: start=0, step=1, limit=1
            $region45: #{_mse_score_jit.1} parent=43 // loop_pre_header
              _
            $region46: #{_mse_score_jit.1} parent=43 // loop_header
              %s228 = sphi 0, %s232
              %p229 = scmp.ge.s32.totalorder %s228, 1
              %s233 = sphi [#allocation3], [#allocation3]
              %s234 = sphi %s2, %s2
            $region47: #{_mse_score_jit.1} parent=43 // loop_header_branch
              %231 = sbr.rel (%p229) target = $region51
            $region48: #{_mse_score_jit.1} parent=43 // loop_body
              %v235 = vld [vmem:[%s233] sm:$0x3]
              %236 = vst [vmem:[%s234] sm:$0x3] %v235
            $region49: #{_mse_score_jit.1} parent=43 // loop_footer
              %s232 = sadd.s32 1, %s228
            $region50: #{_mse_score_jit.1} parent=43 // loop_footer_branch
              %227 = sbr.rel target = $region46
            $region51: #{_mse_score_jit.1} parent=43 // loop_exit
              _
          $region44: #{_mse_score_jit.1} parent=28 // pred_fallthru
            _
        $region29: #{_mse_score_jit.1} parent=24 // pred_fallthru
          _
        // Predicated region
        $region30: #{_mse_score_jit.1} parent=24 // pred_check
          _
        $region31: #{_mse_score_jit.1} parent=24 // pred_check_branch
          %212 = sbr.rel (0) target = $region33
        $region32: #{_mse_score_jit.1} parent=24 // pred_region
          loop: start=0, step=1, limit=1
          $region34: #{_mse_score_jit.1} parent=32 // loop_pre_header
            _
          $region35: #{_mse_score_jit.1} parent=32 // loop_header
            %s215 = sphi 0, %s219
            %p216 = scmp.ge.s32.totalorder %s215, 1
            %s220 = sphi [#allocation3], [#allocation3]
            %s221 = sphi %s2, %s2
          $region36: #{_mse_score_jit.1} parent=32 // loop_header_branch
            %218 = sbr.rel (%p216) target = $region40
          $region37: #{_mse_score_jit.1} parent=32 // loop_body
            %v222 = vld [vmem:[%s220] sm:$0x3]
            %223 = vst [vmem:[%s221] sm:$0x3] %v222
          $region38: #{_mse_score_jit.1} parent=32 // loop_footer
            %s219 = sadd.s32 1, %s215
          $region39: #{_mse_score_jit.1} parent=32 // loop_footer_branch
            %214 = sbr.rel target = $region35
          $region40: #{_mse_score_jit.1} parent=32 // loop_exit
            _
        $region33: #{_mse_score_jit.1} parent=24 // pred_fallthru
          _
      $region25: #{_mse_score_jit.1} parent=20 // pred_fallthru
        _
      %237 = vnop
    $region21: #{_mse_score_jit.1} parent=1 // pred_fallthru
      _
    // Predicated region
    $region52: #{_mse_score_jit.1} parent=1 // pred_check
      _
    $region53: #{_mse_score_jit.1} parent=1 // pred_check_branch
      %239 = sbr.rel (0) target = $region55
    $region54: #{_mse_score_jit.1} parent=1 // pred_region
      _
    $region55: #{_mse_score_jit.1} parent=1 // pred_fallthru
      _

</llo_original>
